<compile_context>
chip_gen: v5e
topology: v5e:2x2
jax: 0.10.0
libtpu: 0.0.40
codegen_flags: <defaults>
</compile_context>

<pallas_src>
import functools

import jax
import jax.numpy as jnp
from jax.experimental import pallas as pl
from jax.experimental.pallas import tpu as pltpu

LANE = 128
HEAD_PAD = 128  # fused V|A head output width (lane-dense, zero padded)


def _round_up(x, m):
    return (x + m - 1) // m * m


# ---------------------------------------------------------------------------
# Kernels (fused V/A head, lane-dense; cast state + activations in-kernel)
# ---------------------------------------------------------------------------
def _ddqn_kernel_fc2(x_ref, w1_ref, b1_ref, w2_ref, b2_ref, wh_ref, bh_ref,
                     o_ref):
    """Forward with fc2 (fc2_dim is not None)."""
    dt = w1_ref.dtype
    x = x_ref[...].astype(dt)                                   # in-kernel cast
    l1 = jnp.maximum(
        jnp.dot(x, w1_ref[...], preferred_element_type=jnp.float32).astype(dt)
        + b1_ref[...], 0.0)
    l2 = jnp.maximum(
        jnp.dot(l1, w2_ref[...], preferred_element_type=jnp.float32).astype(dt)
        + b2_ref[...], 0.0)
    out = (jnp.dot(l2, wh_ref[...], preferred_element_type=jnp.float32)
           + bh_ref[...].astype(jnp.float32))
    o_ref[...] = out.astype(o_ref.dtype)


def _ddqn_kernel_nofc2(x_ref, w1_ref, b1_ref, wh_ref, bh_ref, o_ref):
    """Forward without fc2 (fc2_dim is None)."""
    dt = w1_ref.dtype
    x = x_ref[...].astype(dt)
    l1 = jnp.maximum(
        jnp.dot(x, w1_ref[...], preferred_element_type=jnp.float32).astype(dt)
        + b1_ref[...], 0.0)
    out = (jnp.dot(l1, wh_ref[...], preferred_element_type=jnp.float32)
           + bh_ref[...].astype(jnp.float32))
    o_ref[...] = out.astype(o_ref.dtype)


# ---------------------------------------------------------------------------
# Parameter construction (deterministic, PyTorch-Linear-style uniform init)
# ---------------------------------------------------------------------------
def _linear_params(key, in_dim, out_dim):
    """weight (out, in), bias (out,) -- same shapes as nn.Linear."""
    kw, kb = jax.random.split(key)
    bound = 1.0 / jnp.sqrt(jnp.float32(in_dim))
    w = jax.random.uniform(kw, (out_dim, in_dim), jnp.float32, -bound, bound)
    b = jax.random.uniform(kb, (out_dim,), jnp.float32, -bound, bound)
    return w, b


def init_ddqn_params(key, n_actions, input_dims, fc1_dim, fc2_dim):
    in_dim = input_dims[0]
    keys = jax.random.split(key, 4)
    params = {"fc1": _linear_params(keys[0], in_dim, fc1_dim)}
    if fc2_dim is None:
        params["V"] = _linear_params(keys[2], fc1_dim, 1)
        params["A"] = _linear_params(keys[3], fc1_dim, n_actions)
    else:
        params["fc2"] = _linear_params(keys[1], fc1_dim, fc2_dim)
        params["V"] = _linear_params(keys[2], fc2_dim, 1)
        params["A"] = _linear_params(keys[3], fc2_dim, n_actions)
    return params


def prepare_ddqn_params(params, n_actions, fc2_dim,
                        compute_dtype=jnp.bfloat16):
    """One-time prep (NOT on the per-step forward path):
      * transpose weights to (in, out),
      * zero-pad fc1/fc2 output dims to multiples of 128 (lane-dense hidden),
      * fuse V|A into one zero-padded (hidden_pad, 128) head weight,
      * cast matmul operands + biases to compute_dtype (bf16 by default: the
        MXU is bf16-native on v5e/v6e/v7x; pass f32 for a pure-f32 path).
    """
    w1, b1 = params["fc1"]                       # (fc1, in), (fc1,)
    fc1_dim, in_dim = w1.shape
    fc1_p = _round_up(fc1_dim, LANE)
    W1 = jnp.zeros((in_dim, fc1_p), jnp.float32).at[:, :fc1_dim].set(w1.T)
    B1 = jnp.zeros((1, fc1_p), jnp.float32).at[:, :fc1_dim].set(
        b1.reshape(1, -1))

    if fc2_dim is not None:
        w2, b2 = params["fc2"]                   # (fc2, fc1), (fc2,)
        fc2_real = w2.shape[0]
        fc2_p = _round_up(fc2_real, LANE)
        W2 = jnp.zeros((fc1_p, fc2_p), jnp.float32).at[:fc1_dim,
                                                       :fc2_real].set(w2.T)
        B2 = jnp.zeros((1, fc2_p), jnp.float32).at[:, :fc2_real].set(
            b2.reshape(1, -1))
        hid, hid_p = fc2_real, fc2_p
    else:
        hid, hid_p = fc1_dim, fc1_p

    wv, bv = params["V"]                         # (1, hid), (1,)
    wa, ba = params["A"]                         # (n_actions, hid)
    WH = jnp.zeros((hid_p, HEAD_PAD), jnp.float32)
    WH = WH.at[:hid, 0:1].set(wv.T)
    WH = WH.at[:hid, 1:1 + n_actions].set(wa.T)
    BH = jnp.zeros((1, HEAD_PAD), jnp.float32)
    BH = BH.at[:, 0:1].set(bv.reshape(1, -1))
    BH = BH.at[:, 1:1 + n_actions].set(ba.reshape(1, -1))

    cd = compute_dtype
    prepped = {"w1": W1.astype(cd), "b1": B1.astype(cd),
               "wh": WH.astype(cd), "bh": BH.astype(cd)}
    if fc2_dim is not None:
        prepped["w2"] = W2.astype(cd)
        prepped["b2"] = B2.astype(cd)
    return prepped


# ---------------------------------------------------------------------------
# Wrapper
# ---------------------------------------------------------------------------
@functools.partial(jax.jit,
                   static_argnames=("n_actions", "fc2_dim", "block_b",
                                    "out_dtype"))
def ddqn_forward(state, prepped, n_actions, fc2_dim, block_b=1024,
                 out_dtype=jnp.float32):
    """Returns (V, A) with V: (B, 1), A: (B, n_actions)."""
    B, in_dim = state.shape

    # Batch tiling: no padded copy of the batch -- grid = cdiv(B, tb); Pallas
    # pads the ragged last block's reads and drops out-of-bounds row writes.
    # tb is a multiple of 8 (sublane, f32 state), preferably 16 (bf16 packing).
    b_al = _round_up(max(B, 1), 16 if B >= 16 else 8)
    tb = _round_up(min(block_b, b_al), 8)
    if pl.cdiv(B, tb) == 1 and b_al >= 32:
        # Whole batch would be a single tile: split in two so v7x's second
        # TensorCore has work ("parallel" batch axis). v5e/v6e: still fine.
        tb = _round_up(pl.cdiv(b_al, 2), 16)
    grid_len = pl.cdiv(B, tb)

    fc1_p = prepped["w1"].shape[1]

    def full_spec(arr):
        # Whole array VMEM-resident across all grid steps (constant index map).
        return pl.BlockSpec(arr.shape, lambda i: (0,) * arr.ndim)

    in_specs = [pl.BlockSpec((tb, in_dim), lambda i: (i, 0)),
                full_spec(prepped["w1"]), full_spec(prepped["b1"])]
    args = [state, prepped["w1"], prepped["b1"]]

    if fc2_dim is None:
        kernel = _ddqn_kernel_nofc2
        flops = 2 * grid_len * tb * (in_dim * fc1_p + fc1_p * HEAD_PAD)
        hid_total = fc1_p
    else:
        kernel = _ddqn_kernel_fc2
        fc2_p = prepped["w2"].shape[1]
        in_specs += [full_spec(prepped["w2"]), full_spec(prepped["b2"])]
        args += [prepped["w2"], prepped["b2"]]
        flops = 2 * grid_len * tb * (in_dim * fc1_p + fc1_p * fc2_p
                                     + fc2_p * HEAD_PAD)
        hid_total = fc1_p + fc2_p

    in_specs += [full_spec(prepped["wh"]), full_spec(prepped["bh"])]
    args += [prepped["wh"], prepped["bh"]]

    out_isize = jnp.dtype(out_dtype).itemsize
    weight_bytes = sum(int(a.size) * a.dtype.itemsize for a in args[1:])
    bytes_in = B * in_dim * state.dtype.itemsize + weight_bytes
    bytes_out = grid_len * tb * HEAD_PAD * out_isize
    cost = pl.CostEstimate(flops=flops, transcendentals=0,
                           bytes_accessed=bytes_in + bytes_out)

    # VMEM budget: ~4x actual working set (double-buffered state/output tiles
    # + resident weights + f32 intermediates); small floor, well under the
    # 32 MiB default scoped limit (v7x has only 64 MiB VMEM per TensorCore).
    tile_bytes = 2 * tb * (in_dim * state.dtype.itemsize
                           + HEAD_PAD * out_isize)
    act_bytes = tb * (hid_total + HEAD_PAD) * 4
    vmem_limit = int(max(4 * 1024 * 1024,
                         min(32 * 1024 * 1024,
                             4 * (tile_bytes + weight_bytes + act_bytes))))

    out = pl.pallas_call(
        kernel,
        out_shape=jax.ShapeDtypeStruct((B, HEAD_PAD), out_dtype),
        grid=(grid_len,),
        in_specs=in_specs,
        out_specs=pl.BlockSpec((tb, HEAD_PAD), lambda i: (i, 0)),
        compiler_params=pltpu.CompilerParams(
            dimension_semantics=("parallel",),
            vmem_limit_bytes=vmem_limit),
        cost_estimate=cost,
    )(*args)

    V = out[:, 0:1]
    A = out[:, 1:1 + n_actions]
    return V, A


# Plain-JAX reference (for sanity checking).
def ddqn_forward_ref(state, params, fc2_dim):
    w1, b1 = params["fc1"]
    l1 = jax.nn.relu(state @ w1.T + b1)
    if fc2_dim is None:
        h = l1
    else:
        w2, b2 = params["fc2"]
        h = jax.nn.relu(l1 @ w2.T + b2)
    wv, bv = params["V"]
    wa, ba = params["A"]
    return h @ wv.T + bv, h @ wa.T + ba


# ---------------------------------------------------------------------------
# Main
# ---------------------------------------------------------------------------
if __name__ == "__main__":
    key = jax.random.PRNGKey(0)
    k_param, k_param2, k_state, k_state2 = jax.random.split(key, 4)

    batch = 8
    input_dims = (16,)
    fc1_dim = 64
    fc2_dim = 32
    n_actions = 4

    state = jax.random.normal(k_state, (batch, input_dims[0]), jnp.float32)
    params = init_ddqn_params(k_param, n_actions, input_dims, fc1_dim, fc2_dim)

    # --- exact check: f32 operands, with fc2 ---
    prepped_f32 = prepare_ddqn_params(params, n_actions, fc2_dim,
                                      compute_dtype=jnp.float32)
    V, A = ddqn_forward(state, prepped_f32, n_actions, fc2_dim)
    jax.block_until_ready((V, A))
    V_ref, A_ref = ddqn_forward_ref(state, params, fc2_dim)
    assert V.shape == (batch, 1) and A.shape == (batch, n_actions)
    assert jnp.allclose(V, V_ref, atol=1e-5, rtol=1e-5)
    assert jnp.allclose(A, A_ref, atol=1e-5, rtol=1e-5)

    # --- exact check: fc2_dim=None path ---
    params_n = init_ddqn_params(k_param2, n_actions, input_dims, fc1_dim, None)
    prepped_n = prepare_ddqn_params(params_n, n_actions, None,
                                    compute_dtype=jnp.float32)
    Vn, An = ddqn_forward(state, prepped_n, n_actions, None)
    jax.block_until_ready((Vn, An))
    Vn_ref, An_ref = ddqn_forward_ref(state, params_n, None)
    assert jnp.allclose(Vn, Vn_ref, atol=1e-5, rtol=1e-5)
    assert jnp.allclose(An, An_ref, atol=1e-5, rtol=1e-5)

    # --- ragged batch (grid of 2, last block partially out of bounds) ---
    state_l = jax.random.normal(k_state2, (100, input_dims[0]), jnp.float32)
    VL, AL = ddqn_forward(state_l, prepped_f32, n_actions, fc2_dim)
    jax.block_until_ready((VL, AL))
    VL_ref, AL_ref = ddqn_forward_ref(state_l, params, fc2_dim)
    assert VL.shape == (100, 1) and AL.shape == (100, n_actions)
    assert jnp.allclose(VL, VL_ref, atol=1e-5, rtol=1e-5)
    assert jnp.allclose(AL, AL_ref, atol=1e-5, rtol=1e-5)

    # --- default bf16 operands (MXU-native on all gens), loose tolerance ---
    prepped_bf = prepare_ddqn_params(params, n_actions, fc2_dim)  # bf16 default
    Vb, Ab = ddqn_forward(state, prepped_bf, n_actions, fc2_dim)
    jax.block_until_ready((Vb, Ab))
    assert jnp.allclose(Vb, V_ref, atol=1e-1, rtol=1e-1)
    assert jnp.allclose(Ab, A_ref, atol=1e-1, rtol=1e-1)

    # --- bf16 output writeback (halves output HBM traffic) ---
    Vb2, Ab2 = ddqn_forward(state, prepped_bf, n_actions, fc2_dim,
                            out_dtype=jnp.bfloat16)
    jax.block_until_ready((Vb2, Ab2))
    assert jnp.allclose(Vb2.astype(jnp.float32), V_ref, atol=1e-1, rtol=1e-1)
    assert jnp.allclose(Ab2.astype(jnp.float32), A_ref, atol=1e-1, rtol=1e-1)

    print("KERNEL_OK")
</pallas_src>

<mosaic_0001>
module attributes {stable_mosaic.version = 11 : i64} {
  func.func @_ddqn_kernel_fc2(%arg0: i32, %arg1: memref<8x16xf32, #tpu.memory_space<vmem>>, %arg2: memref<16x128xf32, #tpu.memory_space<vmem>>, %arg3: memref<1x128xf32, #tpu.memory_space<vmem>>, %arg4: memref<128x128xf32, #tpu.memory_space<vmem>>, %arg5: memref<1x128xf32, #tpu.memory_space<vmem>>, %arg6: memref<128x128xf32, #tpu.memory_space<vmem>>, %arg7: memref<1x128xf32, #tpu.memory_space<vmem>>, %arg8: memref<8x128xf32, #tpu.memory_space<vmem>>) attributes {dimension_semantics = [#tpu.dimension_semantics<parallel>], iteration_bounds = array<i64: 1>, scalar_prefetch = 0 : i64, scratch_operands = 0 : i64, tpu.core_type = #tpu.core_type<tc>, window_params = [{transform_indices = @transform_0, window_bounds = array<i64: 8, 16>}, {pipeline_mode = #tpu.pipeline_mode<synchronous>, transform_indices = @transform_1, window_bounds = array<i64: 16, 128>}, {pipeline_mode = #tpu.pipeline_mode<synchronous>, transform_indices = @transform_2, window_bounds = array<i64: 1, 128>}, {pipeline_mode = #tpu.pipeline_mode<synchronous>, transform_indices = @transform_3, window_bounds = array<i64: 128, 128>}, {pipeline_mode = #tpu.pipeline_mode<synchronous>, transform_indices = @transform_4, window_bounds = array<i64: 1, 128>}, {pipeline_mode = #tpu.pipeline_mode<synchronous>, transform_indices = @transform_5, window_bounds = array<i64: 128, 128>}, {pipeline_mode = #tpu.pipeline_mode<synchronous>, transform_indices = @transform_6, window_bounds = array<i64: 1, 128>}, {transform_indices = @transform_7, window_bounds = array<i64: 8, 128>}]} {
    %c0 = arith.constant 0 : index
    %c0_0 = arith.constant 0 : index
    %0 = vector.load %arg1[%c0, %c0_0] : memref<8x16xf32, #tpu.memory_space<vmem>>, vector<8x16xf32>
    %c0_1 = arith.constant 0 : index
    %c0_2 = arith.constant 0 : index
    %1 = vector.load %arg2[%c0_1, %c0_2] : memref<16x128xf32, #tpu.memory_space<vmem>>, vector<16x128xf32>
    %cst = arith.constant dense<0.000000e+00> : vector<8x128xf32>
    %2 = tpu.matmul %0, %1, %cst {dimension_numbers = #tpu.dot_dimension_numbers<[1], [0], [0], [1], [0, 0, 1, 1], [], []>} : vector<8x16xf32>, vector<16x128xf32>, vector<8x128xf32> -> vector<8x128xf32>
    %c0_3 = arith.constant 0 : index
    %c0_4 = arith.constant 0 : index
    %3 = vector.load %arg3[%c0_3, %c0_4] : memref<1x128xf32, #tpu.memory_space<vmem>>, vector<1x128xf32>
    %4 = vector.broadcast %3 : vector<1x128xf32> to vector<8x128xf32>
    %5 = arith.addf %2, %4 : vector<8x128xf32>
    %cst_5 = arith.constant 0.000000e+00 : f32
    %6 = vector.broadcast %cst_5 : f32 to vector<8x128xf32>
    %7 = arith.maximumf %5, %6 : vector<8x128xf32>
    %c0_6 = arith.constant 0 : index
    %c0_7 = arith.constant 0 : index
    %8 = vector.load %arg4[%c0_6, %c0_7] : memref<128x128xf32, #tpu.memory_space<vmem>>, vector<128x128xf32>
    %cst_8 = arith.constant dense<0.000000e+00> : vector<8x128xf32>
    %9 = tpu.matmul %7, %8, %cst_8 {dimension_numbers = #tpu.dot_dimension_numbers<[1], [0], [0], [1], [0, 0, 1, 1], [], []>} : vector<8x128xf32>, vector<128x128xf32>, vector<8x128xf32> -> vector<8x128xf32>
    %c0_9 = arith.constant 0 : index
    %c0_10 = arith.constant 0 : index
    %10 = vector.load %arg5[%c0_9, %c0_10] : memref<1x128xf32, #tpu.memory_space<vmem>>, vector<1x128xf32>
    %11 = vector.broadcast %10 : vector<1x128xf32> to vector<8x128xf32>
    %12 = arith.addf %9, %11 : vector<8x128xf32>
    %cst_11 = arith.constant 0.000000e+00 : f32
    %13 = vector.broadcast %cst_11 : f32 to vector<8x128xf32>
    %14 = arith.maximumf %12, %13 : vector<8x128xf32>
    %c0_12 = arith.constant 0 : index
    %c0_13 = arith.constant 0 : index
    %15 = vector.load %arg6[%c0_12, %c0_13] : memref<128x128xf32, #tpu.memory_space<vmem>>, vector<128x128xf32>
    %cst_14 = arith.constant dense<0.000000e+00> : vector<8x128xf32>
    %16 = tpu.matmul %14, %15, %cst_14 {dimension_numbers = #tpu.dot_dimension_numbers<[1], [0], [0], [1], [0, 0, 1, 1], [], []>} : vector<8x128xf32>, vector<128x128xf32>, vector<8x128xf32> -> vector<8x128xf32>
    %c0_15 = arith.constant 0 : index
    %c0_16 = arith.constant 0 : index
    %17 = vector.load %arg7[%c0_15, %c0_16] : memref<1x128xf32, #tpu.memory_space<vmem>>, vector<1x128xf32>
    %18 = vector.broadcast %17 : vector<1x128xf32> to vector<8x128xf32>
    %19 = arith.addf %16, %18 : vector<8x128xf32>
    %c0_17 = arith.constant 0 : index
    %c0_18 = arith.constant 0 : index
    %20 = vector.load %arg8[%c0_17, %c0_18] : memref<8x128xf32, #tpu.memory_space<vmem>>, vector<8x128xf32>
    tpu.vector_store %arg8[%c0_17, %c0_18], %19 {strides = array<i32>} : memref<8x128xf32, #tpu.memory_space<vmem>>, vector<8x128xf32>,
    return
  }
  func.func @transform_0(%arg0: i32) -> (i32, i32) {
    %c0_i32 = arith.constant 0 : i32
    %c0_i32_0 = arith.constant 0 : i32
    return %arg0, %c0_i32 : i32, i32
  }
  func.func @transform_1(%arg0: i32) -> (i32, i32) {
    %c0_i32 = arith.constant 0 : i32
    %c0_i32_0 = arith.constant 0 : i32
    %c0_i32_1 = arith.constant 0 : i32
    return %c0_i32, %c0_i32_0 : i32, i32
  }
  func.func @transform_2(%arg0: i32) -> (i32, i32) {
    %c0_i32 = arith.constant 0 : i32
    %c0_i32_0 = arith.constant 0 : i32
    %c0_i32_1 = arith.constant 0 : i32
    return %c0_i32, %c0_i32_0 : i32, i32
  }
  func.func @transform_3(%arg0: i32) -> (i32, i32) {
    %c0_i32 = arith.constant 0 : i32
    %c0_i32_0 = arith.constant 0 : i32
    %c0_i32_1 = arith.constant 0 : i32
    return %c0_i32, %c0_i32_0 : i32, i32
  }
  func.func @transform_4(%arg0: i32) -> (i32, i32) {
    %c0_i32 = arith.constant 0 : i32
    %c0_i32_0 = arith.constant 0 : i32
    %c0_i32_1 = arith.constant 0 : i32
    return %c0_i32, %c0_i32_0 : i32, i32
  }
  func.func @transform_5(%arg0: i32) -> (i32, i32) {
    %c0_i32 = arith.constant 0 : i32
    %c0_i32_0 = arith.constant 0 : i32
    %c0_i32_1 = arith.constant 0 : i32
    return %c0_i32, %c0_i32_0 : i32, i32
  }
  func.func @transform_6(%arg0: i32) -> (i32, i32) {
    %c0_i32 = arith.constant 0 : i32
    %c0_i32_0 = arith.constant 0 : i32
    %c0_i32_1 = arith.constant 0 : i32
    return %c0_i32, %c0_i32_0 : i32, i32
  }
  func.func @transform_7(%arg0: i32) -> (i32, i32) {
    %c0_i32 = arith.constant 0 : i32
    %c0_i32_0 = arith.constant 0 : i32
    return %arg0, %c0_i32 : i32, i32
  }
}

</mosaic_0001>

<llo_original>
// kernel: ddqn_forward.1
$region0: #{ddqn_forward.1}
  #allocation0 [shape = 'u32[]', space=smem, size = 0x4, offset = 0x4, fixed_abs, tag = 'smem constant byte address 0x4 - core index']
  #allocation1 [shape = 'u32[72,128]{1,0:T(1,128)}', space=vmem, size = 0x9000, scoped, tag = 'internal scratch']
  %s0 = inlined_call_operand.hbm [shape: f32[8,16], index: 0, kind: input, shape index: {}]
  %s1 = inlined_call_operand.hbm [shape: f32[16,128], index: 1, kind: input, shape index: {}]
  %s2 = inlined_call_operand.hbm [shape: f32[1,128], index: 2, kind: input, shape index: {}]
  %s3 = inlined_call_operand.hbm [shape: f32[128,128], index: 3, kind: input, shape index: {}]
  %s4 = inlined_call_operand.vmem [shape: f32[1,128], index: 4, kind: input, shape index: {}]
  %s5 = inlined_call_operand.hbm [shape: f32[128,128], index: 5, kind: input, shape index: {}]
  %s6 = inlined_call_operand.vmem [shape: f32[1,128], index: 6, kind: input, shape index: {}]
  %s7 = inlined_call_operand.vmem [shape: f32[8,128], index: 7, kind: output, shape index: {}]
  %s8 = sld [smem:[#allocation0]]
  $region58: #{ddqn_forward.1} parent=0
    _
  %s10 = ssub.s32 1, %s8
  %s11 = scalar_select 0, %s10, %s8
  $region1: #{ddqn_forward.1} parent=0
    #allocation2 [shape = 'u8[4096]{0}', space=vmem, size = 0x1000, scoped, tag = 'input window, operand 0, single buffered']
    #allocation3 [shape = 's32[1]{0}', space=sflag, size = 0x4, scoped, tag = 'scoped memory for ddqn_forward.1']
    #allocation4 [shape = 'u8[8192]{0}', space=vmem, size = 0x2000, scoped, tag = 'input window, operand 1, single buffered']
    #allocation5 [shape = 's32[1]{0}', space=sflag, size = 0x4, scoped, tag = 'scoped memory for ddqn_forward.1']
    #allocation6 [shape = 'u8[512]{0}', space=vmem, size = 0x400, scoped, tag = 'input window, operand 2, single buffered']
    #allocation7 [shape = 'u8[65536]{0}', space=vmem, size = 0x10000, scoped, tag = 'input window, operand 3, single buffered']
    #allocation8 [shape = 's32[1]{0}', space=sflag, size = 0x4, scoped, tag = 'scoped memory for ddqn_forward.1']
    #allocation9 [shape = 'u8[65536]{0}', space=vmem, size = 0x10000, scoped, tag = 'input window, operand 5, single buffered']
    %12 = vsyncpa [#allocation3], 0
    %13 = vsyncpa [#allocation5], 0
    %14 = vsyncpa [#allocation8], 0
    // Predicated region
    $region2: #{ddqn_forward.1} parent=1 // pred_check
      _
    $region3: #{ddqn_forward.1} parent=1 // pred_check_branch
      %16 = sbr.rel (0) target = $region5
    $region4: #{ddqn_forward.1} parent=1 // pred_region
      %18 = vsyncadd [#allocation3], 0
      %s20 = sshll.u32 %s0, 4
      %s21 = int_to_ptr.hbm [resolvable:$true] %s20
      %s22 = sshll.u32 [#allocation2], 4
      %s23 = int_to_ptr.vmem [resolvable:$true] %s22
      %25 = dma.hbm_to_vmem [thread:$0]  %s21, 128, %s23, [#allocation3]
    $region5: #{ddqn_forward.1} parent=1 // pred_fallthru
      _
    // Predicated region
    $region6: #{ddqn_forward.1} parent=1 // pred_check
      _
    $region7: #{ddqn_forward.1} parent=1 // pred_check_branch
      %27 = sbr.rel (0) target = $region9
    $region8: #{ddqn_forward.1} parent=1 // pred_region
      %29 = vsyncadd [#allocation5], 0
      %s30 = sshll.u32 %s1, 4
      %s31 = int_to_ptr.hbm [resolvable:$true] %s30
      %s32 = sshll.u32 [#allocation4], 4
      %s33 = int_to_ptr.vmem [resolvable:$true] %s32
      %38 = dma.hbm_to_vmem [thread:$0]  %s31, 256, %s33, [#allocation5], 128, 128, 8
    $region9: #{ddqn_forward.1} parent=1 // pred_fallthru
      _
    // Predicated region
    $region10: #{ddqn_forward.1} parent=1 // pred_check
      _
    $region11: #{ddqn_forward.1} parent=1 // pred_check_branch
      %40 = sbr.rel (0) target = $region13
    $region12: #{ddqn_forward.1} parent=1 // pred_region
      %42 = vsyncadd [#allocation5], 0
      %s44 = sshll.u32 %s2, 4
      %s45 = int_to_ptr.hbm [resolvable:$true] %s44
      %s46 = sshll.u32 [#allocation6], 4
      %s47 = int_to_ptr.vmem [resolvable:$true] %s46
      %49 = dma.hbm_to_vmem [thread:$0]  %s45, 16, %s47, [#allocation5]
    $region13: #{ddqn_forward.1} parent=1 // pred_fallthru
      _
    // Predicated region
    $region14: #{ddqn_forward.1} parent=1 // pred_check
      _
    $region15: #{ddqn_forward.1} parent=1 // pred_check_branch
      %51 = sbr.rel (0) target = $region17
    $region16: #{ddqn_forward.1} parent=1 // pred_region
      %53 = vsyncadd [#allocation8], 0
      %s54 = sshll.u32 %s3, 4
      %s55 = int_to_ptr.hbm [resolvable:$true] %s54
      %s56 = sshll.u32 [#allocation7], 4
      %s57 = int_to_ptr.vmem [resolvable:$true] %s56
      %62 = dma.hbm_to_vmem [thread:$0]  %s55, 2048, %s57, [#allocation8], 128, 128, 8
    $region17: #{ddqn_forward.1} parent=1 // pred_fallthru
      _
    // Predicated region
    $region18: #{ddqn_forward.1} parent=1 // pred_check
      _
    $region19: #{ddqn_forward.1} parent=1 // pred_check_branch
      %64 = sbr.rel (0) target = $region21
    $region20: #{ddqn_forward.1} parent=1 // pred_region
      _
    $region21: #{ddqn_forward.1} parent=1 // pred_fallthru
      _
    // Predicated region
    $region22: #{ddqn_forward.1} parent=1 // pred_check
      _
    $region23: #{ddqn_forward.1} parent=1 // pred_check_branch
      %66 = sbr.rel (0) target = $region25
    $region24: #{ddqn_forward.1} parent=1 // pred_region
      %68 = vsyncadd [#allocation8], 0
      %s69 = sshll.u32 %s5, 4
      %s70 = int_to_ptr.hbm [resolvable:$true] %s69
      %s71 = sshll.u32 [#allocation9], 4
      %s72 = int_to_ptr.vmem [resolvable:$true] %s71
      %77 = dma.hbm_to_vmem [thread:$0]  %s70, 2048, %s72, [#allocation8], 128, 128, 8
    $region25: #{ddqn_forward.1} parent=1 // pred_fallthru
      _
    // Predicated region
    $region26: #{ddqn_forward.1} parent=1 // pred_check
      _
    $region27: #{ddqn_forward.1} parent=1 // pred_check_branch
      %79 = sbr.rel (0) target = $region29
    $region28: #{ddqn_forward.1} parent=1 // pred_region
      _
    $region29: #{ddqn_forward.1} parent=1 // pred_fallthru
      _
    // Predicated region
    $region30: #{ddqn_forward.1} parent=1 // pred_check
      _
    $region31: #{ddqn_forward.1} parent=1 // pred_check_branch
      %81 = sbr.rel (0) target = $region33
    $region32: #{ddqn_forward.1} parent=1 // pred_region
      %83 = dma.done [#allocation3], 128
    $region33: #{ddqn_forward.1} parent=1 // pred_fallthru
      _
    // Predicated region
    $region34: #{ddqn_forward.1} parent=1 // pred_check
      _
    $region35: #{ddqn_forward.1} parent=1 // pred_check_branch
      %85 = sbr.rel (0) target = $region37
    $region36: #{ddqn_forward.1} parent=1 // pred_region
      %87 = dma.done [#allocation5], 256
    $region37: #{ddqn_forward.1} parent=1 // pred_fallthru
      _
    // Predicated region
    $region38: #{ddqn_forward.1} parent=1 // pred_check
      _
    $region39: #{ddqn_forward.1} parent=1 // pred_check_branch
      %89 = sbr.rel (0) target = $region41
    $region40: #{ddqn_forward.1} parent=1 // pred_region
      %91 = dma.done [#allocation5], 16
    $region41: #{ddqn_forward.1} parent=1 // pred_fallthru
      _
    // Predicated region
    $region42: #{ddqn_forward.1} parent=1 // pred_check
      _
    $region43: #{ddqn_forward.1} parent=1 // pred_check_branch
      %93 = sbr.rel (0) target = $region45
    $region44: #{ddqn_forward.1} parent=1 // pred_region
      %95 = dma.done [#allocation8], 2048
    $region45: #{ddqn_forward.1} parent=1 // pred_fallthru
      _
    // Predicated region
    $region46: #{ddqn_forward.1} parent=1 // pred_check
      _
    $region47: #{ddqn_forward.1} parent=1 // pred_check_branch
      %97 = sbr.rel (0) target = $region49
    $region48: #{ddqn_forward.1} parent=1 // pred_region
      %99 = dma.done [#allocation8], 2048
    $region49: #{ddqn_forward.1} parent=1 // pred_fallthru
      _
    %v100 = vld [vmem:[#allocation2] sm:$0xff]
    %v101 = vld [vmem:[#allocation4] sm:$0xff]
    %v102 = vld [vmem:[#allocation4 + $0x8] sm:$0xff]
    %v103 = vld [vmem:[#allocation6] sm:$0x1]
    %v105 = vperm.slane %v103, 0
    %vm107 = vcmask 130048
    %v109 = vsel %vm107, %v100, 0
    %111 = vmatpush.msra.mxu0 0.0
    %112 = vmatpush.msra.mxu0 0.0
    %113 = vmatpush.msra.mxu0 0.0
    %114 = vmatpush.msra.mxu0 0.0
    %115 = vmatpush.msra.mxu0 0.0
    %116 = vmatpush.msra.mxu0 0.0
    %117 = vmatpush.msra.mxu0 0.0
    %118 = vmatpush.msra.mxu0 0.0
    %119 = vmatpush.msra.mxu0 0.0
    %120 = vmatpush.msra.mxu0 0.0
    %121 = vmatpush.msra.mxu0 0.0
    %122 = vmatpush.msra.mxu0 0.0
    %123 = vmatpush.msra.mxu0 0.0
    %124 = vmatpush.msra.mxu0 0.0
    %125 = vmatpush.msra.mxu0 %v102
    %126 = vmatpush.msra.mxu0 %v101
    %127 = vmatmul.f32.gmra.mxu0 %v109
    %v128 = vpop.f32.mrf.mxu0
    %v129 = vadd.f32 %v105, %v128
    %130 = vdwg.mxu0
    %v131 = vmax.f32 %v129, 0.0
    %v132 = vld [vmem:[#allocation7] sm:$0xff]
    %v133 = vld [vmem:[#allocation7 + $0x8] sm:$0xff]
    %v134 = vld [vmem:[#allocation7 + $0x10] sm:$0xff]
    %v135 = vld [vmem:[#allocation7 + $0x18] sm:$0xff]
    %v136 = vld [vmem:[#allocation7 + $0x20] sm:$0xff]
    %v137 = vld [vmem:[#allocation7 + $0x28] sm:$0xff]
    %v138 = vld [vmem:[#allocation7 + $0x30] sm:$0xff]
    %v139 = vld [vmem:[#allocation7 + $0x38] sm:$0xff]
    %v140 = vld [vmem:[#allocation7 + $0x40] sm:$0xff]
    %v141 = vld [vmem:[#allocation7 + $0x48] sm:$0xff]
    %v142 = vld [vmem:[#allocation7 + $0x50] sm:$0xff]
    %v143 = vld [vmem:[#allocation7 + $0x58] sm:$0xff]
    %v144 = vld [vmem:[#allocation7 + $0x60] sm:$0xff]
    %v145 = vld [vmem:[#allocation7 + $0x68] sm:$0xff]
    %v146 = vld [vmem:[#allocation7 + $0x70] sm:$0xff]
    %v147 = vld [vmem:[#allocation7 + $0x78] sm:$0xff]
    %v148 = vld [vmem:[%s4] sm:$0x1]
    %v150 = vperm.slane %v148, 0
    %152 = vmatpush.msra.mxu0 %v147
    %153 = vmatpush.msra.mxu0 %v146
    %154 = vmatpush.msra.mxu0 %v145
    %155 = vmatpush.msra.mxu0 %v144
    %156 = vmatpush.msra.mxu0 %v143
    %157 = vmatpush.msra.mxu0 %v142
    %158 = vmatpush.msra.mxu0 %v141
    %159 = vmatpush.msra.mxu0 %v140
    %160 = vmatpush.msra.mxu0 %v139
    %161 = vmatpush.msra.mxu0 %v138
    %162 = vmatpush.msra.mxu0 %v137
    %163 = vmatpush.msra.mxu0 %v136
    %164 = vmatpush.msra.mxu0 %v135
    %165 = vmatpush.msra.mxu0 %v134
    %166 = vmatpush.msra.mxu0 %v133
    %167 = vmatpush.msra.mxu0 %v132
    %168 = vmatmul.f32.gmra.mxu0 %v131
    %v169 = vpop.f32.mrf.mxu0
    %v170 = vadd.f32 %v150, %v169
    %171 = vdwg.mxu0
    %v172 = vmax.f32 %v170, 0.0
    %v173 = vld [vmem:[#allocation9] sm:$0xff]
    %v174 = vld [vmem:[#allocation9 + $0x8] sm:$0xff]
    %v175 = vld [vmem:[#allocation9 + $0x10] sm:$0xff]
    %v176 = vld [vmem:[#allocation9 + $0x18] sm:$0xff]
    %v177 = vld [vmem:[#allocation9 + $0x20] sm:$0xff]
    %v178 = vld [vmem:[#allocation9 + $0x28] sm:$0xff]
    %v179 = vld [vmem:[#allocation9 + $0x30] sm:$0xff]
    %v180 = vld [vmem:[#allocation9 + $0x38] sm:$0xff]
    %v181 = vld [vmem:[#allocation9 + $0x40] sm:$0xff]
    %v182 = vld [vmem:[#allocation9 + $0x48] sm:$0xff]
    %v183 = vld [vmem:[#allocation9 + $0x50] sm:$0xff]
    %v184 = vld [vmem:[#allocation9 + $0x58] sm:$0xff]
    %v185 = vld [vmem:[#allocation9 + $0x60] sm:$0xff]
    %v186 = vld [vmem:[#allocation9 + $0x68] sm:$0xff]
    %v187 = vld [vmem:[#allocation9 + $0x70] sm:$0xff]
    %v188 = vld [vmem:[#allocation9 + $0x78] sm:$0xff]
    %v189 = vld [vmem:[%s6] sm:$0x1]
    %v191 = vperm.slane %v189, 0
    %193 = vmatpush.msra.mxu0 %v188
    %194 = vmatpush.msra.mxu0 %v187
    %195 = vmatpush.msra.mxu0 %v186
    %196 = vmatpush.msra.mxu0 %v185
    %197 = vmatpush.msra.mxu0 %v184
    %198 = vmatpush.msra.mxu0 %v183
    %199 = vmatpush.msra.mxu0 %v182
    %200 = vmatpush.msra.mxu0 %v181
    %201 = vmatpush.msra.mxu0 %v180
    %202 = vmatpush.msra.mxu0 %v179
    %203 = vmatpush.msra.mxu0 %v178
    %204 = vmatpush.msra.mxu0 %v177
    %205 = vmatpush.msra.mxu0 %v176
    %206 = vmatpush.msra.mxu0 %v175
    %207 = vmatpush.msra.mxu0 %v174
    %208 = vmatpush.msra.mxu0 %v173
    %209 = vmatmul.f32.gmra.mxu0 %v172
    %v210 = vpop.f32.mrf.mxu0
    %v211 = vadd.f32 %v191, %v210
    %212 = vdwg.mxu0
    %213 = vst [vmem:[%s7] sm:$0xff] %v211
    // Predicated region
    $region50: #{ddqn_forward.1} parent=1 // pred_check
      _
    $region51: #{ddqn_forward.1} parent=1 // pred_check_branch
      %215 = sbr.rel (0) target = $region53
    $region52: #{ddqn_forward.1} parent=1 // pred_region
      _
    $region53: #{ddqn_forward.1} parent=1 // pred_fallthru
      _
    // Predicated region
    $region54: #{ddqn_forward.1} parent=1 // pred_check
      _
    $region55: #{ddqn_forward.1} parent=1 // pred_check_branch
      %217 = sbr.rel (0) target = $region57
    $region56: #{ddqn_forward.1} parent=1 // pred_region
      _
    $region57: #{ddqn_forward.1} parent=1 // pred_fallthru
      _
    %218 = vsyncpa [#allocation3], 1
    %219 = vsyncpa [#allocation5], 1
    %220 = vsyncpa [#allocation8], 1

</llo_original>
